<compile_context>
chip_gen: v6e
topology: v6e:2x2x1
jax: 0.10.0
libtpu: 0.0.40
codegen_flags: <defaults>
</compile_context>

<pallas_src>
import math

import jax
import jax.numpy as jnp
from jax import lax
from jax.experimental import pallas as pl
from jax.experimental.pallas import tpu as pltpu


_MIN_VMEM_LIMIT = 32 * 1024 * 1024  # never request less than the default scoped VMEM


def _pick_tile(dim, candidates):
    """Largest candidate that evenly divides `dim`, else the full dim."""
    for c in candidates:
        if dim % c == 0:
            return c
    return dim


# ---------------------------------------------------------------------------
# Linear projection: y = x @ wT   (wT is already transposed / scaled outside)
# ---------------------------------------------------------------------------
def _linear_kernel(x_ref, wt_ref, o_ref):
    o_ref[...] = jnp.dot(
        x_ref[...], wt_ref[...], preferred_element_type=jnp.float32
    ).astype(o_ref.dtype)


def _linear_pallas(x2d, wT, *, out_dtype, tm):
    M, E = x2d.shape
    # Tile-derived VMEM budget (2 pipeline buffers per operand + headroom).
    bytes_per_step = (tm * E * x2d.dtype.itemsize
                      + E * E * wT.dtype.itemsize
                      + tm * E * jnp.dtype(out_dtype).itemsize)
    vmem_limit = max(4 * bytes_per_step, _MIN_VMEM_LIMIT)

    return pl.pallas_call(
        _linear_kernel,
        out_shape=jax.ShapeDtypeStruct((M, E), out_dtype),
        grid_spec=pltpu.PrefetchScalarGridSpec(
            num_scalar_prefetch=0,
            grid=(M // tm,),
            in_specs=[
                pl.BlockSpec((tm, E), lambda i: (i, 0)),
                # Weight block index is constant across the grid, so Pallas
                # keeps it resident instead of re-fetching it each step.
                pl.BlockSpec((E, E), lambda i: (0, 0)),
            ],
            out_specs=pl.BlockSpec((tm, E), lambda i: (i, 0)),
        ),
        compiler_params=pltpu.CompilerParams(
            dimension_semantics=("parallel",),
            vmem_limit_bytes=vmem_limit,
        ),
    )(x2d, wT)


# ---------------------------------------------------------------------------
# Flash attention (online softmax); Q is already pre-scaled by 1/sqrt(E).
# ---------------------------------------------------------------------------
def _flash_kernel(q_ref, k_ref, v_ref, o_ref, m_sc, l_sc, acc_sc):
    ki = pl.program_id(2)

    @pl.when(ki == 0)
    def _init():
        m_sc[...] = jnp.full(m_sc.shape, -jnp.inf, m_sc.dtype)
        l_sc[...] = jnp.zeros(l_sc.shape, l_sc.dtype)
        acc_sc[...] = jnp.zeros(acc_sc.shape, acc_sc.dtype)

    q = q_ref[0]                 # (TQ, E) bf16, pre-scaled
    k = k_ref[0]                 # (TK, E) bf16
    # scores[q, k] = sum_e Q[q, e] * K[k, e] — contract last dims directly
    # (no in-kernel transpose of K).
    s = lax.dot_general(q, k, (((1,), (1,)), ((), ())),
                        preferred_element_type=jnp.float32)      # (TQ, TK) f32

    m_prev = m_sc[...]
    m_new = jnp.maximum(m_prev, jnp.max(s, axis=-1, keepdims=True))
    alpha = jnp.exp(m_prev - m_new)                               # f32
    p = jnp.exp(s - m_new)                                        # f32
    l_sc[...] = alpha * l_sc[...] + jnp.sum(p, axis=-1, keepdims=True)
    acc_sc[...] = alpha * acc_sc[...] + jnp.dot(
        p.astype(v_ref.dtype), v_ref[0], preferred_element_type=jnp.float32)
    m_sc[...] = m_new

    @pl.when(ki == pl.num_programs(2) - 1)
    def _finalize():
        inv_l = pl.reciprocal(l_sc[...], approx=True)   # EUP, frees the VALU
        o_ref[0] = (acc_sc[...] * inv_l).astype(o_ref.dtype)


def _flash_attention_pallas(Q, K, V, *, out_dtype, tq, tk):
    B, S, E = Q.shape
    in_b = Q.dtype.itemsize
    out_b = jnp.dtype(out_dtype).itemsize
    per_step = (tq * E + 2 * tk * E) * in_b + tq * E * out_b
    scratch_bytes = (2 * tq + tq * E) * 4
    vmem_limit = max(4 * per_step + scratch_bytes, _MIN_VMEM_LIMIT)

    return pl.pallas_call(
        _flash_kernel,
        out_shape=jax.ShapeDtypeStruct((B, S, E), out_dtype),
        grid_spec=pltpu.PrefetchScalarGridSpec(
            num_scalar_prefetch=0,
            grid=(B, S // tq, S // tk),
            in_specs=[
                pl.BlockSpec((1, tq, E), lambda b, qi, ki: (b, qi, 0)),
                pl.BlockSpec((1, tk, E), lambda b, qi, ki: (b, ki, 0)),
                pl.BlockSpec((1, tk, E), lambda b, qi, ki: (b, ki, 0)),
            ],
            out_specs=pl.BlockSpec((1, tq, E), lambda b, qi, ki: (b, qi, 0)),
            scratch_shapes=[
                pltpu.VMEM((tq, 1), jnp.float32),   # running max  m
                pltpu.VMEM((tq, 1), jnp.float32),   # running sum  l
                pltpu.VMEM((tq, E), jnp.float32),   # output accumulator
            ],
        ),
        compiler_params=pltpu.CompilerParams(
            dimension_semantics=("parallel", "parallel", "arbitrary"),
            vmem_limit_bytes=vmem_limit,
        ),
    )(Q, K, V)


# ---------------------------------------------------------------------------
# Public wrapper: matches the PyTorch Attention.forward semantics.
# ---------------------------------------------------------------------------
def attention_pallas(query, key, value, w_q, w_k, w_v,
                     *, compute_dtype=jnp.bfloat16):
    """query/key/value: [B, S, E]; w_*: [E, E] (out_features, in_features)."""
    B, S, E = query.shape
    scale = 1.0 / math.sqrt(E)

    # Pre-transpose the nn.Linear weights once (y = x @ W^T) and fold the
    # softmax 1/sqrt(E) scale into the Q projection — both free in the wrapper.
    wqT = (w_q.astype(jnp.float32) * scale).T.astype(compute_dtype)
    wkT = w_k.T.astype(compute_dtype)
    wvT = w_v.T.astype(compute_dtype)

    # Pack all batch rows into a single (B*S, E) GEMM (bigger MXU M-dim).
    tm = _pick_tile(B * S, (512, 256, 128))
    q2 = query.reshape(B * S, E).astype(compute_dtype)
    k2 = key.reshape(B * S, E).astype(compute_dtype)
    v2 = value.reshape(B * S, E).astype(compute_dtype)

    Q = _linear_pallas(q2, wqT, out_dtype=compute_dtype, tm=tm).reshape(B, S, E)
    K = _linear_pallas(k2, wkT, out_dtype=compute_dtype, tm=tm).reshape(B, S, E)
    V = _linear_pallas(v2, wvT, out_dtype=compute_dtype, tm=tm).reshape(B, S, E)

    # Flash tiling over the sequence (falls back to full S for toy shapes).
    tq = _pick_tile(S, (256, 128))
    tk = _pick_tile(S, (512, 256, 128))
    return _flash_attention_pallas(Q, K, V, out_dtype=query.dtype, tq=tq, tk=tk)


def attention_reference(query, key, value, w_q, w_k, w_v):
    """Pure-JAX f32 reference mirroring the PyTorch forward."""
    E = query.shape[-1]
    Q = query @ w_q.T
    K = key @ w_k.T
    V = value @ w_v.T
    scores = jnp.einsum("bqe,bke->bqk", Q, K) / math.sqrt(E)
    p = jax.nn.softmax(scores, axis=2)
    return jnp.einsum("bqk,bke->bqe", p, V)


if __name__ == "__main__":
    B, S, E = 2, 8, 32
    key0 = jax.random.PRNGKey(0)
    kq, kk, kv, kwq, kwk, kwv = jax.random.split(key0, 6)

    query = jax.random.normal(kq, (B, S, E), dtype=jnp.float32)
    key_ = jax.random.normal(kk, (B, S, E), dtype=jnp.float32)
    value = jax.random.normal(kv, (B, S, E), dtype=jnp.float32)

    # nn.Linear-style weights (out_features, in_features), U(-1/sqrt(E), 1/sqrt(E)).
    bound = 1.0 / math.sqrt(E)
    w_q = jax.random.uniform(kwq, (E, E), jnp.float32, -bound, bound)
    w_k = jax.random.uniform(kwk, (E, E), jnp.float32, -bound, bound)
    w_v = jax.random.uniform(kwv, (E, E), jnp.float32, -bound, bound)

    out = attention_pallas(query, key_, value, w_q, w_k, w_v)
    out = jax.block_until_ready(out)

    ref = attention_reference(query, key_, value, w_q, w_k, w_v)
    assert out.shape == (B, S, E)
    assert out.dtype == query.dtype
    max_err = float(jnp.max(jnp.abs(out - ref)))
    # bf16 matmul operands (f32 accumulation) -> loosened tolerance vs f32 ref.
    assert jnp.allclose(out, ref, atol=5e-2, rtol=5e-2), (
        f"mismatch vs reference (max abs err {max_err:.4e})")

    print("KERNEL_OK")
</pallas_src>

<mosaic_0001>
module attributes {stable_mosaic.version = 11 : i64} {
  func.func @_linear_kernel(%arg0: i32, %arg1: memref<16x32xbf16, #tpu.memory_space<vmem>>, %arg2: memref<32x32xbf16, #tpu.memory_space<vmem>>, %arg3: memref<16x32xbf16, #tpu.memory_space<vmem>>) attributes {dimension_semantics = [#tpu.dimension_semantics<parallel>], iteration_bounds = array<i64: 1>, scalar_prefetch = 0 : i64, scratch_operands = 0 : i64, tpu.core_type = #tpu.core_type<tc>, window_params = [{transform_indices = @transform_0, window_bounds = array<i64: 16, 32>}, {pipeline_mode = #tpu.pipeline_mode<synchronous>, transform_indices = @transform_1, window_bounds = array<i64: 32, 32>}, {transform_indices = @transform_2, window_bounds = array<i64: 16, 32>}]} {
    %c0 = arith.constant 0 : index
    %c0_0 = arith.constant 0 : index
    %0 = vector.load %arg1[%c0, %c0_0] : memref<16x32xbf16, #tpu.memory_space<vmem>>, vector<16x32xbf16>
    %c0_1 = arith.constant 0 : index
    %c0_2 = arith.constant 0 : index
    %1 = vector.load %arg2[%c0_1, %c0_2] : memref<32x32xbf16, #tpu.memory_space<vmem>>, vector<32x32xbf16>
    %cst = arith.constant dense<0.000000e+00> : vector<16x32xf32>
    %2 = tpu.matmul %0, %1, %cst {dimension_numbers = #tpu.dot_dimension_numbers<[1], [0], [0], [1], [0, 0, 1, 1], [], []>} : vector<16x32xbf16>, vector<32x32xbf16>, vector<16x32xf32> -> vector<16x32xf32>
    %3 = arith.truncf %2 : vector<16x32xf32> to vector<16x32xbf16>
    %c0_3 = arith.constant 0 : index
    %c0_4 = arith.constant 0 : index
    %4 = vector.load %arg3[%c0_3, %c0_4] : memref<16x32xbf16, #tpu.memory_space<vmem>>, vector<16x32xbf16>
    tpu.vector_store %arg3[%c0_3, %c0_4], %3 {strides = array<i32>} : memref<16x32xbf16, #tpu.memory_space<vmem>>, vector<16x32xbf16>,
    return
  }
  func.func @transform_0(%arg0: i32) -> (i32, i32) {
    %c0_i32 = arith.constant 0 : i32
    %c0_i32_0 = arith.constant 0 : i32
    return %arg0, %c0_i32 : i32, i32
  }
  func.func @transform_1(%arg0: i32) -> (i32, i32) {
    %c0_i32 = arith.constant 0 : i32
    %c0_i32_0 = arith.constant 0 : i32
    %c0_i32_1 = arith.constant 0 : i32
    return %c0_i32, %c0_i32_0 : i32, i32
  }
  func.func @transform_2(%arg0: i32) -> (i32, i32) {
    %c0_i32 = arith.constant 0 : i32
    %c0_i32_0 = arith.constant 0 : i32
    return %arg0, %c0_i32 : i32, i32
  }
}

</mosaic_0001>

<llo_original>
// kernel: tpu_custom_call.1
$region0: #{tpu_custom_call.1}
  #allocation0 [shape = 'u32[]', space=smem, size = 0x4, offset = 0x4, fixed_abs, tag = 'smem constant byte address 0x4 - core index']
  #allocation1 [shape = 'u32[144,128]{1,0:T(1,128)}', space=vmem, size = 0x12000, scoped, tag = 'internal scratch']
  %s0 = inlined_call_operand.hbm [shape: bf16[16,32], index: 0, kind: input, shape index: {}]
  %s1 = inlined_call_operand.hbm [shape: bf16[32,32], index: 1, kind: input, shape index: {}]
  %s2 = inlined_call_operand.hbm [shape: bf16[16,32], index: 2, kind: output, shape index: {}]
  %s3 = sld [smem:[#allocation0]]
  $region26: #{tpu_custom_call.1} parent=0
    _
  %s5 = ssub.s32 1, %s3
  %s6 = scalar_select 0, %s5, %s3
  $region1: #{tpu_custom_call.1} parent=0
    #allocation2 [shape = 'u8[4096]{0}', space=vmem, size = 0x1000, scoped, tag = 'input window, operand 0, single buffered']
    #allocation3 [shape = 's32[1]{0}', space=sflag, size = 0x4, scoped, tag = 'scoped memory for tpu_custom_call.1']
    #allocation4 [shape = 's32[1]{0}', space=sflag, size = 0x4, scoped, tag = 'scoped memory for tpu_custom_call.1']
    #allocation5 [shape = 'u8[8192]{0}', space=vmem, size = 0x2000, scoped, tag = 'input window, operand 1, single buffered']
    #allocation6 [shape = 's32[1]{0}', space=sflag, size = 0x4, scoped, tag = 'scoped memory for tpu_custom_call.1']
    #allocation7 [shape = 'u8[4096]{0}', space=vmem, size = 0x1000, scoped, tag = 'output window, operand 0, single buffered']
    %7 = vsyncpa [#allocation3], 0
    %8 = vsyncpa [#allocation6], 0
    %9 = vsyncpa [#allocation4], 0
    // Predicated region
    $region2: #{tpu_custom_call.1} parent=1 // pred_check
      _
    $region3: #{tpu_custom_call.1} parent=1 // pred_check_branch
      %11 = sbr.rel (0) target = $region5
    $region4: #{tpu_custom_call.1} parent=1 // pred_region
      %s13 = ssub.s32 128, 128
      %14 = vsyncadd [#allocation3], %s13
      %s15 = sshll.u32 [#allocation2], 4
      %s16 = int_to_ptr.vmem [resolvable:$true] %s15
      %21 = dma.hbm_to_vmem [thread:$0]  %s0, 128, %s16, [#allocation3], 64, 64, 4
    $region5: #{tpu_custom_call.1} parent=1 // pred_fallthru
      _
    // Predicated region
    $region6: #{tpu_custom_call.1} parent=1 // pred_check
      _
    $region7: #{tpu_custom_call.1} parent=1 // pred_check_branch
      %23 = sbr.rel (0) target = $region9
    $region8: #{tpu_custom_call.1} parent=1 // pred_region
      %s25 = ssub.s32 256, 256
      %26 = vsyncadd [#allocation6], %s25
      %s27 = sshll.u32 [#allocation5], 4
      %s28 = int_to_ptr.vmem [resolvable:$true] %s27
      %33 = dma.hbm_to_vmem [thread:$0]  %s1, 256, %s28, [#allocation6], 64, 64, 4
    $region9: #{tpu_custom_call.1} parent=1 // pred_fallthru
      _
    // Predicated region
    $region10: #{tpu_custom_call.1} parent=1 // pred_check
      _
    $region11: #{tpu_custom_call.1} parent=1 // pred_check_branch
      %35 = sbr.rel (0) target = $region13
    $region12: #{tpu_custom_call.1} parent=1 // pred_region
      %36 = dma.done [#allocation3], 128
    $region13: #{tpu_custom_call.1} parent=1 // pred_fallthru
      _
    // Predicated region
    $region14: #{tpu_custom_call.1} parent=1 // pred_check
      _
    $region15: #{tpu_custom_call.1} parent=1 // pred_check_branch
      %38 = sbr.rel (0) target = $region17
    $region16: #{tpu_custom_call.1} parent=1 // pred_region
      %39 = dma.done [#allocation6], 256
    $region17: #{tpu_custom_call.1} parent=1 // pred_fallthru
      _
    %v41 = vld [vmem:[#allocation2] sm:$0xf]
    %v42 = vld [vmem:[#allocation2 + $0x4] sm:$0xf]
    %v43 = vld [vmem:[#allocation5] sm:$0xf]
    %v44 = vld [vmem:[#allocation5 + $0x4] sm:$0xf]
    %v45 = vld [vmem:[#allocation5 + $0x8] sm:$0xf]
    %v46 = vld [vmem:[#allocation5 + $0xc] sm:$0xf]
    %v49 = vunpack.c.l.b16 %v41
    %v50 = vunpack.c.l.b16 %v42
    %v51 = vpack.c.b16 %v50, %v49
    %v56 = vunpack.c.l.b16 %v43
    %v57 = vunpack.c.l.b16 %v44
    %v58 = vunpack.c.l.b16 %v45
    %v59 = vunpack.c.l.b16 %v46
    %v60 = vpack.c.b16 %v57, %v56
    %v61 = vpack.c.b16 %v59, %v58
    %vm64 = vcmask 261120
    %v66 = vsel %vm64, %v51, 0
    %68 = vmatprep.subr.bf16.mxu0 0
    %69 = vmatpush1.bf16.msra.mxu0 0
    %70 = vmatprep.subr.bf16.mxu0 0
    %71 = vmatpush1.bf16.msra.mxu0 0
    %72 = vmatprep.subr.bf16.mxu0 0
    %73 = vmatpush1.bf16.msra.mxu0 0
    %74 = vmatprep.subr.bf16.mxu0 0
    %75 = vmatpush1.bf16.msra.mxu0 0
    %76 = vmatprep.subr.bf16.mxu0 0
    %77 = vmatpush1.bf16.msra.mxu0 0
    %78 = vmatprep.subr.bf16.mxu0 0
    %79 = vmatpush1.bf16.msra.mxu0 0
    %80 = vmatprep.subr.bf16.mxu0 0
    %81 = vmatpush1.bf16.msra.mxu0 %v61
    %82 = vmatprep.subr.bf16.mxu0 0
    %83 = vmatpush1.bf16.msra.mxu0 %v60
    %84 = vmatprep.subr.bf16.mxu0 0
    %85 = vmatpush2.bf16.msra.mxu0 0
    %86 = vmatprep.subr.bf16.mxu0 0
    %87 = vmatpush2.bf16.msra.mxu0 0
    %88 = vmatprep.subr.bf16.mxu0 0
    %89 = vmatpush2.bf16.msra.mxu0 0
    %90 = vmatprep.subr.bf16.mxu0 0
    %91 = vmatpush2.bf16.msra.mxu0 0
    %92 = vmatprep.subr.bf16.mxu0 0
    %93 = vmatpush2.bf16.msra.mxu0 0
    %94 = vmatprep.subr.bf16.mxu0 0
    %95 = vmatpush2.bf16.msra.mxu0 0
    %96 = vmatprep.subr.bf16.mxu0 0
    %97 = vmatpush2.bf16.msra.mxu0 0
    %98 = vmatprep.subr.bf16.mxu0 0
    %99 = vmatpush2.bf16.msra.mxu0 0
    %100 = vmatprep.mubr.bf16.mxu0 0
    %101 = vmatmul.mubr.bf16.gmra.mxu0 %v66
    %v102 = vpop.f32.mrf.mxu0
    %v103 = vadd.f32 0.0, %v102
    %v104 = vpop.f32.mrf.mxu0
    %v105 = vpop.f32.mrf.mxu0
    %v106 = vadd.f32 0.0, %v105
    %v107 = vpop.f32.mrf.mxu0
    %108 = vdwg.mxu0
    %v109 = vpack.c.bf16 %v106, %v103
    %v111 = vunpack.c.l.b16 %v109
    %v112 = vunpack.c.h.b16 %v109
    %v113 = vpack.c.b16 %v111, %v111
    %v114 = vpack.c.b16 %v112, %v112
    %vm117 = vcmask 257024
    %118 = vst.msk [vmem:[#allocation7] sm:$0xf] %vm117, %v113
    %119 = vst.msk [vmem:[#allocation7 + $0x4] sm:$0xf] %vm117, %v114
    // Predicated region
    $region18: #{tpu_custom_call.1} parent=1 // pred_check
      _
    $region19: #{tpu_custom_call.1} parent=1 // pred_check_branch
      %121 = sbr.rel (0) target = $region21
    $region20: #{tpu_custom_call.1} parent=1 // pred_region
      %s123 = ssub.s32 128, 128
      %124 = vsyncadd [#allocation4], %s123
      %s125 = sshll.u32 [#allocation7], 4
      %s126 = int_to_ptr.vmem [resolvable:$true] %s125
      %131 = dma.vmem_to_hbm [thread:$0]  %s126, 128, %s2, [#allocation4], 64, 64, 4
    $region21: #{tpu_custom_call.1} parent=1 // pred_fallthru
      _
    // Predicated region
    $region22: #{tpu_custom_call.1} parent=1 // pred_check
      _
    $region23: #{tpu_custom_call.1} parent=1 // pred_check_branch
      %133 = sbr.rel (0) target = $region25
    $region24: #{tpu_custom_call.1} parent=1 // pred_region
      %134 = dma.done [#allocation4], 128
    $region25: #{tpu_custom_call.1} parent=1 // pred_fallthru
      _
    %135 = vsyncpa [#allocation3], 1
    %136 = vsyncpa [#allocation6], 1
    %137 = vsyncpa [#allocation4], 1

</llo_original>
